<compile_context>
chip_gen: v7x
topology: tpu7x:2x2x1
jax: 0.10.0
libtpu: 0.0.40
codegen_flags: <defaults>
</compile_context>

<pallas_src>
import math

import jax
import jax.numpy as jnp
from jax.experimental import pallas as pl
from jax.experimental.pallas import tpu as pltpu


_TILE_ELEMS = 2048 * 512             # ~4 MiB (f32) of each input per grid step
_VMEM_LIMIT_BYTES = 40 * 1024 * 1024


def _sublane_multiple(dtype):
    """Minimum second-minor tile multiple for a dtype (8/16/32 for 4/2/1 B)."""
    return {4: 8, 2: 16, 1: 32}.get(jnp.dtype(dtype).itemsize, 8)


def _default_num_cores():
    """2 TensorCores per chip only on v7x; on v5e/v6e a size-2 'parallel' axis
    is just a serial outer loop (pure overhead), so collapse it to 1."""
    try:
        kind = jax.devices()[0].device_kind.lower()
    except Exception:
        return 1
    return 2 if "v7" in kind else 1


def _masked_l1_sums_jnp(pred, targ):
    """Pure-XLA fallback (tiny inputs / flat sizes not divisible by 128)."""
    x = pred.astype(jnp.float32)
    t = targ.astype(jnp.float32)
    mask = t > 0.0
    s = jnp.sum(jnp.where(mask, jnp.abs(t - x), 0.0))
    c = jnp.sum(mask.astype(jnp.int32))
    return s, c


def _masked_l1_sums(pred, targ, *, tile_elems=_TILE_ELEMS, num_cores=None):
    """Returns (sum of |t - x| over targets > 0, int32 count of such points)."""
    assert pred.shape == targ.shape, (pred.shape, targ.shape)
    total = math.prod(pred.shape)

    sub = max(_sublane_multiple(pred.dtype), _sublane_multiple(targ.dtype))

    # Lane-dense width: largest of {512, 256, 128} that divides the flat size
    # and still leaves >= `sub` rows.  The reshape below is then a free
    # bitcast — no padded / sliced HBM copy is ever materialized.
    lanes = None
    for cand in (512, 256, 128):
        if total % cand == 0 and total // cand >= sub:
            lanes = cand
            break
    if lanes is None:
        return _masked_l1_sums_jnp(pred, targ)

    rows = total // lanes
    pred2 = pred.reshape(rows, lanes)
    targ2 = targ.reshape(rows, lanes)

    max_tm = max(sub, (tile_elems // lanes) // sub * sub)
    tm = min(max_tm, (rows // sub) * sub)
    nblocks = -(-rows // tm)

    if num_cores is None:
        num_cores = _default_num_cores()
    num_cores = max(1, min(num_cores, nblocks))
    steps = -(-nblocks // num_cores)

    # True when the grid over-covers the rows (ragged last block, or trailing
    # out-of-range blocks on the last core).  Out-of-range rows contain
    # unspecified data and must be excluded in-kernel.
    needs_row_mask = (num_cores * steps * tm) != rows

    def kernel(x_ref, t_ref, sum_ref, cnt_ref):
        i = pl.program_id(1)

        @pl.when(i == 0)
        def _init():
            sum_ref[...] = jnp.zeros_like(sum_ref)
            cnt_ref[...] = jnp.zeros_like(cnt_ref)

        x = x_ref[...].astype(jnp.float32)
        t = t_ref[...].astype(jnp.float32)

        valid = t > 0.0
        if needs_row_mask:
            row0 = (pl.program_id(0) * steps + i) * tm
            rid = row0 + jax.lax.broadcasted_iota(jnp.int32, (tm, 1), 0)
            valid = jnp.logical_and(valid, rid < rows)

        diff = jnp.where(valid, jnp.abs(t - x), 0.0)

        # (tm, lanes) -> (tm//8, 8, lanes) is layout-preserving; summing over
        # axis 0 is pure VALU vreg adds (no per-step cross-lane XLU reduce).
        sum_ref[0] = sum_ref[0] + diff.reshape(tm // 8, 8, lanes).sum(axis=0)
        cnt_ref[0] = cnt_ref[0] + (
            valid.astype(jnp.int32).reshape(tm // 8, 8, lanes).sum(axis=0))

    row_map = lambda c, i: (c * steps + i, 0)
    out_map = lambda c, i: (c, 0, 0)

    sum_out, cnt_out = pl.pallas_call(
        kernel,
        out_shape=(
            jax.ShapeDtypeStruct((num_cores, 8, lanes), jnp.float32),
            jax.ShapeDtypeStruct((num_cores, 8, lanes), jnp.int32),
        ),
        grid_spec=pltpu.PrefetchScalarGridSpec(
            num_scalar_prefetch=0,
            grid=(num_cores, steps),
            in_specs=[
                pl.BlockSpec((tm, lanes), row_map),
                pl.BlockSpec((tm, lanes), row_map),
            ],
            out_specs=(
                pl.BlockSpec((1, 8, lanes), out_map),
                pl.BlockSpec((1, 8, lanes), out_map),
            ),
        ),
        compiler_params=pltpu.CompilerParams(
            dimension_semantics=("parallel", "arbitrary"),
            vmem_limit_bytes=_VMEM_LIMIT_BYTES,
        ),
    )(pred2, targ2)

    # NOTE: the final int32 count overflows above ~2.1e9 valid elements.
    return jnp.sum(sum_out), jnp.sum(cnt_out)


def l1_loss(inputs, targets, *, tile_elems=_TILE_ELEMS, num_cores=None):
    """JAX/Pallas equivalent of L1Loss.forward (masked mean absolute error)."""
    s, cnt = _masked_l1_sums(inputs, targets, tile_elems=tile_elems,
                             num_cores=num_cores)
    cnt_f = cnt.astype(jnp.float32)
    # PyTorch: no valid points -> (targets - inputs).mean() * 0 == 0.0
    return jnp.where(cnt > 0, s / jnp.maximum(cnt_f, 1.0), jnp.float32(0.0))


def _reference_l1_loss(inputs, targets):
    """Pure-JAX reference for verification."""
    x = inputs.astype(jnp.float32)
    t = targets.astype(jnp.float32)
    mask = t > 0.0
    val = jnp.where(mask, jnp.abs(t - x), 0.0)
    cnt = jnp.sum(mask.astype(jnp.float32))
    return jnp.where(cnt > 0.0, jnp.sum(val) / jnp.maximum(cnt, 1.0),
                     jnp.float32(0.0))


if __name__ == "__main__":
    key = jax.random.PRNGKey(0)
    ks = jax.random.split(key, 8)

    # Test 1: small NCHW problem, default config (lanes=256, single step).
    x1 = jax.random.normal(ks[0], (2, 4, 16, 16), dtype=jnp.float32)
    t1 = jax.random.normal(ks[1], (2, 4, 16, 16), dtype=jnp.float32)
    out1 = jax.block_until_ready(l1_loss(x1, t1))
    ref1 = jax.block_until_ready(_reference_l1_loss(x1, t1))
    assert jnp.allclose(out1, ref1, rtol=1e-5, atol=1e-6), (out1, ref1)

    # Test 2: no valid points -> PyTorch fallback path, loss must be exactly 0.
    out0 = jax.block_until_ready(l1_loss(x1, -jnp.abs(t1)))
    assert float(out0) == 0.0, out0

    # Test 3: multi-step grid with a ragged last row-block (rows=10, tm=8);
    # exercises the in-kernel row mask (no padded HBM copy in the wrapper).
    x3 = jax.random.normal(ks[2], (2, 4, 40, 16), dtype=jnp.float32)
    t3 = jax.random.normal(ks[3], (2, 4, 40, 16), dtype=jnp.float32)
    out3 = jax.block_until_ready(l1_loss(x3, t3, tile_elems=8 * 512))
    ref3 = jax.block_until_ready(_reference_l1_loss(x3, t3))
    assert jnp.allclose(out3, ref3, rtol=1e-5, atol=1e-6), (out3, ref3)

    # Test 4: forced two-core 'parallel' axis (2 row-blocks, one per core;
    # runs as a serial outer loop on single-TC chips).
    x4 = jax.random.normal(ks[4], (2, 4, 32, 32), dtype=jnp.float32)
    t4 = jax.random.normal(ks[5], (2, 4, 32, 32), dtype=jnp.float32)
    out4 = jax.block_until_ready(l1_loss(x4, t4, tile_elems=8 * 512,
                                         num_cores=2))
    ref4 = jax.block_until_ready(_reference_l1_loss(x4, t4))
    assert jnp.allclose(out4, ref4, rtol=1e-5, atol=1e-6), (out4, ref4)

    # Test 5: bf16 inputs streamed in native dtype (row tile multiple of 16).
    x5 = jax.random.normal(ks[6], (2, 4, 32, 32), dtype=jnp.bfloat16)
    t5 = jax.random.normal(ks[7], (2, 4, 32, 32), dtype=jnp.bfloat16)
    out5 = jax.block_until_ready(l1_loss(x5, t5))
    ref5 = jax.block_until_ready(_reference_l1_loss(x5, t5))
    assert jnp.allclose(out5, ref5, rtol=1e-4, atol=1e-5), (out5, ref5)

    # Test 6: flat size not divisible by 128 -> pure-XLA fallback path.
    x6 = jax.random.normal(ks[0], (3, 5, 7, 11), dtype=jnp.float32)
    t6 = jax.random.normal(ks[1], (3, 5, 7, 11), dtype=jnp.float32)
    out6 = jax.block_until_ready(l1_loss(x6, t6))
    ref6 = jax.block_until_ready(_reference_l1_loss(x6, t6))
    assert jnp.allclose(out6, ref6, rtol=1e-5, atol=1e-6), (out6, ref6)

    print("KERNEL_OK")
</pallas_src>

<mosaic_0001>
module attributes {stable_mosaic.version = 11 : i64} {
  func.func @kernel(%arg0: i32, %arg1: i32, %arg2: memref<8x256xf32, #tpu.memory_space<vmem>>, %arg3: memref<8x256xf32, #tpu.memory_space<vmem>>, %arg4: memref<1x8x256xf32, #tpu.memory_space<vmem>>, %arg5: memref<1x8x256xi32, #tpu.memory_space<vmem>>) attributes {dimension_semantics = [#tpu.dimension_semantics<parallel>, #tpu.dimension_semantics<arbitrary>], iteration_bounds = array<i64: 1, 1>, scalar_prefetch = 0 : i64, scratch_operands = 0 : i64, tpu.core_type = #tpu.core_type<tc>, window_params = [{transform_indices = @transform_0, window_bounds = array<i64: 8, 256>}, {transform_indices = @transform_1, window_bounds = array<i64: 8, 256>}, {transform_indices = @transform_2, window_bounds = array<i64: 1, 8, 256>}, {transform_indices = @transform_3, window_bounds = array<i64: 1, 8, 256>}]} {
    %c0_i32 = arith.constant 0 : i32
    %0 = arith.cmpi eq, %arg1, %c0_i32 : i32
    %1 = arith.extui %0 : i1 to i32
    %c0_i32_0 = arith.constant 0 : i32
    %2 = arith.cmpi ne, %1, %c0_i32_0 : i32
    scf.if %2 {
      %cst_19 = arith.constant 0.000000e+00 : f32
      %28 = vector.broadcast %cst_19 : f32 to vector<1x8x256xf32>
      %c0_20 = arith.constant 0 : index
      %c0_21 = arith.constant 0 : index
      %c0_22 = arith.constant 0 : index
      %29 = vector.load %arg4[%c0_20, %c0_21, %c0_22] : memref<1x8x256xf32, #tpu.memory_space<vmem>>, vector<1x8x256xf32>
      tpu.vector_store %arg4[%c0_20, %c0_21, %c0_22], %28 {strides = array<i32>} : memref<1x8x256xf32, #tpu.memory_space<vmem>>, vector<1x8x256xf32>,
      %c0_i32_23 = arith.constant 0 : i32
      %30 = vector.broadcast %c0_i32_23 : i32 to vector<1x8x256xi32>
      %c0_24 = arith.constant 0 : index
      %c0_25 = arith.constant 0 : index
      %c0_26 = arith.constant 0 : index
      %31 = vector.load %arg5[%c0_24, %c0_25, %c0_26] : memref<1x8x256xi32, #tpu.memory_space<vmem>>, vector<1x8x256xi32>
      tpu.vector_store %arg5[%c0_24, %c0_25, %c0_26], %30 {strides = array<i32>} : memref<1x8x256xi32, #tpu.memory_space<vmem>>, vector<1x8x256xi32>,
    } else {
    }
    %c0 = arith.constant 0 : index
    %c0_1 = arith.constant 0 : index
    %3 = vector.load %arg2[%c0, %c0_1] : memref<8x256xf32, #tpu.memory_space<vmem>>, vector<8x256xf32>
    %c0_2 = arith.constant 0 : index
    %c0_3 = arith.constant 0 : index
    %4 = vector.load %arg3[%c0_2, %c0_3] : memref<8x256xf32, #tpu.memory_space<vmem>>, vector<8x256xf32>
    %cst = arith.constant 0.000000e+00 : f32
    %5 = vector.broadcast %cst : f32 to vector<8x256xf32>
    %6 = arith.cmpf ogt, %4, %5 : vector<8x256xf32>
    %7 = arith.subf %4, %3 : vector<8x256xf32>
    %8 = math.absf %7 : vector<8x256xf32>
    %cst_4 = arith.constant 0.000000e+00 : f32
    %9 = vector.broadcast %cst_4 : f32 to vector<8x256xf32>
    %10 = arith.select %6, %8, %9 : vector<8x256xi1>, vector<8x256xf32>
    %c0_5 = arith.constant 0 : index
    %c0_6 = arith.constant 0 : index
    %c0_7 = arith.constant 0 : index
    %11 = vector.load %arg4[%c0_5, %c0_6, %c0_7] : memref<1x8x256xf32, #tpu.memory_space<vmem>>, vector<1x8x256xf32>
    %12 = vector.shape_cast %11 : vector<1x8x256xf32> to vector<8x256xf32>
    %13 = vector.shape_cast %10 : vector<8x256xf32> to vector<1x8x256xf32>
    %cst_8 = arith.constant dense<0.000000e+00> : vector<8x256xf32>
    %14 = vector.multi_reduction <add>, %13, %cst_8 [0] : vector<1x8x256xf32> to vector<8x256xf32>
    %15 = arith.addf %12, %14 : vector<8x256xf32>
    %c0_9 = arith.constant 0 : index
    %c0_10 = arith.constant 0 : index
    %c0_11 = arith.constant 0 : index
    %16 = vector.load %arg4[%c0_9, %c0_10, %c0_11] : memref<1x8x256xf32, #tpu.memory_space<vmem>>, vector<1x8x256xf32>
    %17 = vector.shape_cast %16 : vector<1x8x256xf32> to vector<8x256xf32>
    %18 = vector.shape_cast %15 : vector<8x256xf32> to vector<1x8x256xf32>
    tpu.vector_store %arg4[%c0_9, %c0_10, %c0_11], %18 {strides = array<i32>} : memref<1x8x256xf32, #tpu.memory_space<vmem>>, vector<1x8x256xf32>,
    %c0_12 = arith.constant 0 : index
    %c0_13 = arith.constant 0 : index
    %c0_14 = arith.constant 0 : index
    %19 = vector.load %arg5[%c0_12, %c0_13, %c0_14] : memref<1x8x256xi32, #tpu.memory_space<vmem>>, vector<1x8x256xi32>
    %20 = vector.shape_cast %19 : vector<1x8x256xi32> to vector<8x256xi32>
    %21 = arith.extui %6 : vector<8x256xi1> to vector<8x256xi32>
    %22 = vector.shape_cast %21 : vector<8x256xi32> to vector<1x8x256xi32>
    %cst_15 = arith.constant dense<0> : vector<8x256xi32>
    %23 = vector.multi_reduction <add>, %22, %cst_15 [0] : vector<1x8x256xi32> to vector<8x256xi32>
    %24 = arith.addi %20, %23 : vector<8x256xi32>
    %c0_16 = arith.constant 0 : index
    %c0_17 = arith.constant 0 : index
    %c0_18 = arith.constant 0 : index
    %25 = vector.load %arg5[%c0_16, %c0_17, %c0_18] : memref<1x8x256xi32, #tpu.memory_space<vmem>>, vector<1x8x256xi32>
    %26 = vector.shape_cast %25 : vector<1x8x256xi32> to vector<8x256xi32>
    %27 = vector.shape_cast %24 : vector<8x256xi32> to vector<1x8x256xi32>
    tpu.vector_store %arg5[%c0_16, %c0_17, %c0_18], %27 {strides = array<i32>} : memref<1x8x256xi32, #tpu.memory_space<vmem>>, vector<1x8x256xi32>,
    return
  }
  func.func @transform_0(%arg0: i32, %arg1: i32) -> (i32, i32) {
    %c1_i32 = arith.constant 1 : i32
    %0 = arith.muli %arg0, %c1_i32 : i32
    %1 = arith.addi %0, %arg1 : i32
    %c0_i32 = arith.constant 0 : i32
    %c0_i32_0 = arith.constant 0 : i32
    return %1, %c0_i32 : i32, i32
  }
  func.func @transform_1(%arg0: i32, %arg1: i32) -> (i32, i32) {
    %c1_i32 = arith.constant 1 : i32
    %0 = arith.muli %arg0, %c1_i32 : i32
    %1 = arith.addi %0, %arg1 : i32
    %c0_i32 = arith.constant 0 : i32
    %c0_i32_0 = arith.constant 0 : i32
    return %1, %c0_i32 : i32, i32
  }
  func.func @transform_2(%arg0: i32, %arg1: i32) -> (i32, i32, i32) {
    %c0_i32 = arith.constant 0 : i32
    %c0_i32_0 = arith.constant 0 : i32
    %c0_i32_1 = arith.constant 0 : i32
    return %arg0, %c0_i32, %c0_i32_0 : i32, i32, i32
  }
  func.func @transform_3(%arg0: i32, %arg1: i32) -> (i32, i32, i32) {
    %c0_i32 = arith.constant 0 : i32
    %c0_i32_0 = arith.constant 0 : i32
    %c0_i32_1 = arith.constant 0 : i32
    return %arg0, %c0_i32, %c0_i32_0 : i32, i32, i32
  }
}

</mosaic_0001>

<llo_original>
// kernel: tpu_custom_call.1
$region0: #{tpu_custom_call.1}
  #allocation0 [shape = 'u32[]', space=smem, size = 0x4, offset = 0x4, fixed_abs, tag = 'smem constant byte address 0x4 - core index']
  #allocation1 [shape = 'u32[144,128]{1,0:T(1,128)}', space=vmem, size = 0x12000, scoped, tag = 'internal scratch']
  %s0 = inlined_call_operand.hbm [shape: f32[8,256], index: 0, kind: input, shape index: {}]
  %s1 = inlined_call_operand.hbm [shape: f32[8,256], index: 1, kind: input, shape index: {}]
  %s2 = inlined_call_operand.hbm [shape: f32[1,8,256], index: 2, kind: output, shape index: {0}]
  %s3 = inlined_call_operand.hbm [shape: s32[1,8,256], index: 3, kind: output, shape index: {1}]
  %4 = xla_tuple %s2, %s3
  %s5 = sld [smem:[#allocation0]]
  $region38: #{tpu_custom_call.1} parent=0
    _
  %s7 = ssub.s32 1, %s5
  %s8 = scalar_select 0, %s7, %s5
  $region1: #{tpu_custom_call.1} parent=0
    #allocation2 [shape = 'u8[8192]{0}', space=vmem, size = 0x2000, scoped, tag = 'input window, operand 0, single buffered']
    #allocation3 [shape = 's32[1]{0}', space=sflag, size = 0x4, scoped, tag = 'scoped memory for tpu_custom_call.1']
    #allocation4 [shape = 's32[1]{0}', space=sflag, size = 0x4, scoped, tag = 'scoped memory for tpu_custom_call.1']
    #allocation5 [shape = 'u8[8192]{0}', space=vmem, size = 0x2000, scoped, tag = 'input window, operand 1, single buffered']
    #allocation6 [shape = 's32[1]{0}', space=sflag, size = 0x4, scoped, tag = 'scoped memory for tpu_custom_call.1']
    #allocation7 [shape = 'u8[8192]{0}', space=vmem, size = 0x2000, scoped, tag = 'output window, operand 0, single buffered']
    #allocation8 [shape = 'u8[8192]{0}', space=vmem, size = 0x2000, scoped, tag = 'output window, operand 1, single buffered']
    #allocation9 [shape = 's32[1]{0}', space=sflag, size = 0x4, scoped, tag = 'scoped memory for tpu_custom_call.1']
    %9 = vsyncpa [#allocation3], 0
    %10 = vsyncpa [#allocation6], 0
    %11 = vsyncpa [#allocation4], 0
    %12 = vsyncpa [#allocation9], 0
    // Predicated region
    $region2: #{tpu_custom_call.1} parent=1 // pred_check
      _
    $region3: #{tpu_custom_call.1} parent=1 // pred_check_branch
      %14 = sbr.rel (0) target = $region5
    $region4: #{tpu_custom_call.1} parent=1 // pred_region
      %s15 = sadd.s32 0, 0
      %s17 = ssub.s32 256, 256
      %18 = vsyncadd [#allocation3], %s17
      %s19 = smul.addr %s15, 2
      %s20 = smul.addr %s19, 128
      %s21 = scalar_lea.hbm %s0, %s20
      %s23 = sshll.u32 [#allocation2], 4
      %s24 = int_to_ptr.vmem [resolvable:$true] %s23
      %26 = dma.hbm_to_vmem [thread:$0]  %s21, 256, %s24, [#allocation3]
    $region5: #{tpu_custom_call.1} parent=1 // pred_fallthru
      _
    // Predicated region
    $region6: #{tpu_custom_call.1} parent=1 // pred_check
      _
    $region7: #{tpu_custom_call.1} parent=1 // pred_check_branch
      %28 = sbr.rel (0) target = $region9
    $region8: #{tpu_custom_call.1} parent=1 // pred_region
      %s29 = sadd.s32 0, 0
      %s31 = ssub.s32 256, 256
      %32 = vsyncadd [#allocation6], %s31
      %s33 = smul.addr %s29, 2
      %s34 = smul.addr %s33, 128
      %s35 = scalar_lea.hbm %s1, %s34
      %s37 = sshll.u32 [#allocation5], 4
      %s38 = int_to_ptr.vmem [resolvable:$true] %s37
      %40 = dma.hbm_to_vmem [thread:$0]  %s35, 256, %s38, [#allocation6]
    $region9: #{tpu_custom_call.1} parent=1 // pred_fallthru
      _
    // Predicated region
    $region10: #{tpu_custom_call.1} parent=1 // pred_check
      _
    $region11: #{tpu_custom_call.1} parent=1 // pred_check_branch
      %42 = sbr.rel (0) target = $region13
    $region12: #{tpu_custom_call.1} parent=1 // pred_region
      %43 = dma.done [#allocation3], 256
    $region13: #{tpu_custom_call.1} parent=1 // pred_fallthru
      _
    // Predicated region
    $region14: #{tpu_custom_call.1} parent=1 // pred_check
      _
    $region15: #{tpu_custom_call.1} parent=1 // pred_check_branch
      %45 = sbr.rel (0) target = $region17
    $region16: #{tpu_custom_call.1} parent=1 // pred_region
      %46 = dma.done [#allocation6], 256
    $region17: #{tpu_custom_call.1} parent=1 // pred_fallthru
      _
    %s47 = sadd.s32 0, 0
    %s48 = sadd.s32 0, 0
    %p49 = scmp.eq.s32.totalorder 0, 0
    // Predicated region
    $region18: #{tpu_custom_call.1} parent=1 // pred_check
      %p50 = pneg %p49
    $region19: #{tpu_custom_call.1} parent=1 // pred_check_branch
      %52 = sbr.rel (%p50) target = $region21
    $region20: #{tpu_custom_call.1} parent=1 // pred_region
      %53 = vst [vmem:[#allocation7] sm:$0xff] 0.0
      %54 = vst [vmem:[#allocation7 + $0x8] sm:$0xff] 0.0
      %55 = vst [vmem:[#allocation8] sm:$0xff] 0
      %56 = vst [vmem:[#allocation8 + $0x8] sm:$0xff] 0
    $region21: #{tpu_custom_call.1} parent=1 // pred_fallthru
      _
    %v57 = vld [vmem:[#allocation2] sm:$0xff]
    %v58 = vld [vmem:[#allocation2 + $0x8] sm:$0xff]
    %v59 = vld [vmem:[#allocation5] sm:$0xff]
    %v60 = vld [vmem:[#allocation5 + $0x8] sm:$0xff]
    %vm61 = vcmp.gt.f32.partialorder %v59, 0.0
    %vm62 = vcmp.gt.f32.partialorder %v60, 0.0
    %v63 = vsub.f32 %v59, %v57
    %v64 = vsub.f32 %v60, %v58
    %v65 = vand.u32 2147483647, %v63
    %v66 = vand.u32 2147483647, %v64
    %v67 = vsel %vm61, %v65, 0.0
    %v68 = vsel %vm62, %v66, 0.0
    %v69 = vld [vmem:[#allocation7] sm:$0xff]
    %v70 = vld [vmem:[#allocation7 + $0x8] sm:$0xff]
    %v71 = vadd.f32 %v67, 0.0
    %v72 = vadd.f32 %v68, 0.0
    %v73 = vadd.f32 %v69, %v71
    %v74 = vadd.f32 %v70, %v72
    %75 = vst [vmem:[#allocation7] sm:$0xff] %v73
    %76 = vst [vmem:[#allocation7 + $0x8] sm:$0xff] %v74
    %v77 = vld [vmem:[#allocation8] sm:$0xff]
    %v78 = vld [vmem:[#allocation8 + $0x8] sm:$0xff]
    %v79 = vsel %vm61, 1, 0
    %v80 = vsel %vm62, 1, 0
    %v81 = vadd.s32 %v77, %v79
    %v82 = vadd.s32 %v78, %v80
    %83 = vst [vmem:[#allocation8] sm:$0xff] %v81
    %84 = vst [vmem:[#allocation8 + $0x8] sm:$0xff] %v82
    // Predicated region
    $region22: #{tpu_custom_call.1} parent=1 // pred_check
      _
    $region23: #{tpu_custom_call.1} parent=1 // pred_check_branch
      %86 = sbr.rel (0) target = $region25
    $region24: #{tpu_custom_call.1} parent=1 // pred_region
      %s88 = ssub.s32 256, 256
      %89 = vsyncadd [#allocation4], %s88
      %s91 = sshll.u32 [#allocation7], 4
      %s92 = int_to_ptr.vmem [resolvable:$true] %s91
      %94 = dma.vmem_to_hbm [thread:$0]  %s92, 256, %s2, [#allocation4]
    $region25: #{tpu_custom_call.1} parent=1 // pred_fallthru
      _
    // Predicated region
    $region26: #{tpu_custom_call.1} parent=1 // pred_check
      _
    $region27: #{tpu_custom_call.1} parent=1 // pred_check_branch
      %96 = sbr.rel (0) target = $region29
    $region28: #{tpu_custom_call.1} parent=1 // pred_region
      %s98 = ssub.s32 256, 256
      %99 = vsyncadd [#allocation9], %s98
      %s101 = sshll.u32 [#allocation8], 4
      %s102 = int_to_ptr.vmem [resolvable:$true] %s101
      %104 = dma.vmem_to_hbm [thread:$0]  %s102, 256, %s3, [#allocation9]
    $region29: #{tpu_custom_call.1} parent=1 // pred_fallthru
      _
    // Predicated region
    $region30: #{tpu_custom_call.1} parent=1 // pred_check
      _
    $region31: #{tpu_custom_call.1} parent=1 // pred_check_branch
      %106 = sbr.rel (0) target = $region33
    $region32: #{tpu_custom_call.1} parent=1 // pred_region
      %107 = dma.done [#allocation4], 256
    $region33: #{tpu_custom_call.1} parent=1 // pred_fallthru
      _
    // Predicated region
    $region34: #{tpu_custom_call.1} parent=1 // pred_check
      _
    $region35: #{tpu_custom_call.1} parent=1 // pred_check_branch
      %109 = sbr.rel (0) target = $region37
    $region36: #{tpu_custom_call.1} parent=1 // pred_region
      %110 = dma.done [#allocation9], 256
    $region37: #{tpu_custom_call.1} parent=1 // pred_fallthru
      _
    %111 = vsyncpa [#allocation3], 1
    %112 = vsyncpa [#allocation6], 1
    %113 = vsyncpa [#allocation4], 1
    %114 = vsyncpa [#allocation9], 1

</llo_original>
